<compile_context>
chip_gen: v7x
topology: tpu7x:2x2x1
jax: 0.10.0
libtpu: 0.0.40
codegen_flags: <defaults>
</compile_context>

<pallas_src>
import jax
import jax.numpy as jnp
from jax.experimental import pallas as pl
from jax.experimental.pallas import tpu as pltpu


def _mll_concat_kernel(xt_ref, zb_ref, w1t_ref, w2t_ref, b2_ref, o_ref):
    # Feature-first tiles: points ride the lane axis (lane-dense loads/stores).
    xt = xt_ref[0]                                            # (Din, tile_n) bf16

    # h = relu(W1x @ x + (W1z @ z + b1)); latent term precomputed per batch.
    h = jnp.dot(w1t_ref[...], xt,
                preferred_element_type=jnp.float32)           # (H, tile_n) f32
    h = jnp.maximum(h + zb_ref[0], 0.0)                       # f32 bias-add + ReLU

    out = jnp.dot(w2t_ref[...], h.astype(jnp.bfloat16),
                  preferred_element_type=jnp.float32)         # (Dout, tile_n) f32
    out = out + b2_ref[...]
    o_ref[0] = out.astype(o_ref.dtype)


def generative_mll_concat_forward(x, z_per_batch, w1, b1, w2, b2, *,
                                  tile_n=1024, out_dtype=jnp.float32):
    """out = relu(concat(x, z_b) @ W1 + b1) @ W2 + b2, z broadcast per batch.

    x:            (B, N, Din) float
    z_per_batch:  (B, L)
    w1: (Din+L, H), b1: (1, H), w2: (H, Dout), b2: (1, Dout)
    returns       (B, N, Dout) in `out_dtype`
    """
    B, N, Din = x.shape
    L = z_per_batch.shape[-1]
    H = w1.shape[1]
    Dout = w2.shape[1]
    assert w1.shape[0] == Din + L

    tile_n = min(tile_n, N)
    # TODO(synk): ragged N (N % tile_n != 0) needs a padded/masked tail tile.
    assert N % tile_n == 0
    nt = N // tile_n

    f32 = jnp.float32
    bf16 = jnp.bfloat16

    # Hoisted latent contribution: z_bias[b] = z[b] @ W1[Din:] + b1   -> (B, H, 1), f32.
    z_bias = (z_per_batch.astype(f32) @ w1[Din:].astype(f32)
              + b1.astype(f32).reshape(1, H)).reshape(B, H, 1)

    # Feature-first, bf16 MXU operands; biases stay f32.
    xt = jnp.transpose(x, (0, 2, 1)).astype(bf16)          # (B, Din, N)
    w1xt = jnp.transpose(w1[:Din], (1, 0)).astype(bf16)    # (H, Din)
    w2t = jnp.transpose(w2, (1, 0)).astype(bf16)           # (Dout, H)
    b2t = b2.astype(f32).reshape(Dout, 1)                  # (Dout, 1)

    out_t = pl.pallas_call(
        _mll_concat_kernel,
        out_shape=jax.ShapeDtypeStruct((B, Dout, N), out_dtype),
        grid_spec=pltpu.PrefetchScalarGridSpec(
            num_scalar_prefetch=0,
            grid=(B, nt),
            in_specs=[
                pl.BlockSpec((1, Din, tile_n), lambda b, n: (b, 0, n)),  # x (feat-first)
                pl.BlockSpec((1, H, 1), lambda b, n: (b, 0, 0)),         # per-batch z bias
                pl.BlockSpec((H, Din), lambda b, n: (0, 0)),             # W1x^T (resident)
                pl.BlockSpec((Dout, H), lambda b, n: (0, 0)),            # W2^T  (resident)
                pl.BlockSpec((Dout, 1), lambda b, n: (0, 0)),            # b2    (resident)
            ],
            out_specs=pl.BlockSpec((1, Dout, tile_n), lambda b, n: (b, 0, n)),
        ),
        compiler_params=pltpu.CompilerParams(
            dimension_semantics=("parallel", "parallel")),
    )(xt, z_bias, w1xt, w2t, b2t)

    # Back to the module's [B, N, Dout] layout.
    return jnp.transpose(out_t, (0, 2, 1))


if __name__ == "__main__":
    # Small shapes consistent with the module:
    #   n_input_dim=3 (3D coords), n_latent_dim=13, n_output_dim=4, hidden=64.
    B, N = 2, 256
    n_input_dim, n_latent_dim, n_output_dim = 3, 13, 4
    hidden = 64
    Din = n_input_dim

    key = jax.random.PRNGKey(0)
    kx, kz, kw1, kb1, kw2, kb2 = jax.random.split(key, 6)

    x = jax.random.uniform(kx, (B, N, n_input_dim), dtype=jnp.float32)
    z_per_batch = jax.random.normal(kz, (B, n_latent_dim), dtype=jnp.float32)

    # Deterministic synthetic decoder parameters (not a checkpoint load).
    w1 = jax.random.normal(kw1, (n_input_dim + n_latent_dim, hidden), dtype=jnp.float32) * 0.1
    b1 = jax.random.normal(kb1, (1, hidden), dtype=jnp.float32) * 0.01
    w2 = jax.random.normal(kw2, (hidden, n_output_dim), dtype=jnp.float32) * 0.1
    b2 = jax.random.normal(kb2, (1, n_output_dim), dtype=jnp.float32) * 0.01

    out = generative_mll_concat_forward(x, z_per_batch, w1, b1, w2, b2, tile_n=N)
    out = jax.block_until_ready(out)
    assert out.shape == (B, N, n_output_dim)

    # Reference 1: same numeric path (z hoisted, bf16 operands, f32 accumulate).
    xb = x.astype(jnp.bfloat16).astype(jnp.float32)
    w1xb = w1[:Din].astype(jnp.bfloat16).astype(jnp.float32)
    w2b = w2.astype(jnp.bfloat16).astype(jnp.float32)
    z_bias_ref = z_per_batch @ w1[Din:] + b1                       # (B, H) f32
    h_ref = jnp.maximum(jnp.einsum('bnd,dh->bnh', xb, w1xb)
                        + z_bias_ref[:, None, :], 0.0)
    h_ref = h_ref.astype(jnp.bfloat16).astype(jnp.float32)
    out_ref = jnp.einsum('bnh,ho->bno', h_ref, w2b) + b2.reshape(1, 1, n_output_dim)
    assert jnp.allclose(out, out_ref, rtol=1e-4, atol=1e-4)

    # Reference 2: original module semantics (f32 concat path), loose bf16 tolerance.
    z_exp = jnp.broadcast_to(z_per_batch[:, None, :], (B, N, n_latent_dim))
    feat = jnp.concatenate([x, z_exp], axis=-1)
    out_full = jnp.maximum(feat @ w1 + b1, 0.0) @ w2 + b2
    assert jnp.allclose(out, out_full, rtol=3e-2, atol=3e-2)

    print("KERNEL_OK")
</pallas_src>

<mosaic_0001>
module attributes {stable_mosaic.version = 11 : i64} {
  func.func @_mll_concat_kernel(%arg0: i32, %arg1: i32, %arg2: memref<1x3x256xbf16, #tpu.memory_space<vmem>>, %arg3: memref<1x64x1xf32, #tpu.memory_space<vmem>>, %arg4: memref<64x3xbf16, #tpu.memory_space<vmem>>, %arg5: memref<4x64xbf16, #tpu.memory_space<vmem>>, %arg6: memref<4x1xf32, #tpu.memory_space<vmem>>, %arg7: memref<1x4x256xf32, #tpu.memory_space<vmem>>) attributes {dimension_semantics = [#tpu.dimension_semantics<parallel>, #tpu.dimension_semantics<parallel>], iteration_bounds = array<i64: 2, 1>, scalar_prefetch = 0 : i64, scratch_operands = 0 : i64, tpu.core_type = #tpu.core_type<tc>, window_params = [{transform_indices = @transform_0, window_bounds = array<i64: 1, 3, 256>}, {transform_indices = @transform_1, window_bounds = array<i64: 1, 64, 1>}, {pipeline_mode = #tpu.pipeline_mode<synchronous>, transform_indices = @transform_2, window_bounds = array<i64: 64, 3>}, {pipeline_mode = #tpu.pipeline_mode<synchronous>, transform_indices = @transform_3, window_bounds = array<i64: 4, 64>}, {pipeline_mode = #tpu.pipeline_mode<synchronous>, transform_indices = @transform_4, window_bounds = array<i64: 4, 1>}, {transform_indices = @transform_5, window_bounds = array<i64: 1, 4, 256>}]} {
    %c0 = arith.constant 0 : index
    %c0_0 = arith.constant 0 : index
    %c0_1 = arith.constant 0 : index
    %0 = vector.load %arg2[%c0, %c0_0, %c0_1] : memref<1x3x256xbf16, #tpu.memory_space<vmem>>, vector<1x3x256xbf16>
    %1 = vector.shape_cast %0 : vector<1x3x256xbf16> to vector<3x256xbf16>
    %c0_2 = arith.constant 0 : index
    %c0_3 = arith.constant 0 : index
    %2 = vector.load %arg4[%c0_2, %c0_3] : memref<64x3xbf16, #tpu.memory_space<vmem>>, vector<64x3xbf16>
    %cst = arith.constant dense<0.000000e+00> : vector<64x256xf32>
    %3 = tpu.matmul %2, %1, %cst {dimension_numbers = #tpu.dot_dimension_numbers<[1], [0], [0], [1], [0, 0, 1, 1], [], []>} : vector<64x3xbf16>, vector<3x256xbf16>, vector<64x256xf32> -> vector<64x256xf32>
    %c0_4 = arith.constant 0 : index
    %c0_5 = arith.constant 0 : index
    %c0_6 = arith.constant 0 : index
    %4 = vector.load %arg3[%c0_4, %c0_5, %c0_6] : memref<1x64x1xf32, #tpu.memory_space<vmem>>, vector<1x64x1xf32>
    %5 = vector.shape_cast %4 : vector<1x64x1xf32> to vector<64x1xf32>
    %6 = vector.broadcast %5 : vector<64x1xf32> to vector<64x256xf32>
    %7 = arith.addf %3, %6 : vector<64x256xf32>
    %cst_7 = arith.constant 0.000000e+00 : f32
    %8 = vector.broadcast %cst_7 : f32 to vector<64x256xf32>
    %9 = arith.maximumf %7, %8 : vector<64x256xf32>
    %c0_8 = arith.constant 0 : index
    %c0_9 = arith.constant 0 : index
    %10 = vector.load %arg5[%c0_8, %c0_9] : memref<4x64xbf16, #tpu.memory_space<vmem>>, vector<4x64xbf16>
    %11 = arith.truncf %9 : vector<64x256xf32> to vector<64x256xbf16>
    %cst_10 = arith.constant dense<0.000000e+00> : vector<4x256xf32>
    %12 = tpu.matmul %10, %11, %cst_10 {dimension_numbers = #tpu.dot_dimension_numbers<[1], [0], [0], [1], [0, 0, 1, 1], [], []>} : vector<4x64xbf16>, vector<64x256xbf16>, vector<4x256xf32> -> vector<4x256xf32>
    %c0_11 = arith.constant 0 : index
    %c0_12 = arith.constant 0 : index
    %13 = vector.load %arg6[%c0_11, %c0_12] : memref<4x1xf32, #tpu.memory_space<vmem>>, vector<4x1xf32>
    %14 = vector.broadcast %13 : vector<4x1xf32> to vector<4x256xf32>
    %15 = arith.addf %12, %14 : vector<4x256xf32>
    %c0_13 = arith.constant 0 : index
    %c0_14 = arith.constant 0 : index
    %c0_15 = arith.constant 0 : index
    %16 = vector.load %arg7[%c0_13, %c0_14, %c0_15] : memref<1x4x256xf32, #tpu.memory_space<vmem>>, vector<1x4x256xf32>
    %17 = vector.shape_cast %16 : vector<1x4x256xf32> to vector<4x256xf32>
    %18 = vector.shape_cast %15 : vector<4x256xf32> to vector<1x4x256xf32>
    tpu.vector_store %arg7[%c0_13, %c0_14, %c0_15], %18 {strides = array<i32>} : memref<1x4x256xf32, #tpu.memory_space<vmem>>, vector<1x4x256xf32>,
    return
  }
  func.func @transform_0(%arg0: i32, %arg1: i32) -> (i32, i32, i32) {
    %c0_i32 = arith.constant 0 : i32
    %c0_i32_0 = arith.constant 0 : i32
    return %arg0, %c0_i32, %arg1 : i32, i32, i32
  }
  func.func @transform_1(%arg0: i32, %arg1: i32) -> (i32, i32, i32) {
    %c0_i32 = arith.constant 0 : i32
    %c0_i32_0 = arith.constant 0 : i32
    %c0_i32_1 = arith.constant 0 : i32
    return %arg0, %c0_i32, %c0_i32_0 : i32, i32, i32
  }
  func.func @transform_2(%arg0: i32, %arg1: i32) -> (i32, i32) {
    %c0_i32 = arith.constant 0 : i32
    %c0_i32_0 = arith.constant 0 : i32
    %c0_i32_1 = arith.constant 0 : i32
    return %c0_i32, %c0_i32_0 : i32, i32
  }
  func.func @transform_3(%arg0: i32, %arg1: i32) -> (i32, i32) {
    %c0_i32 = arith.constant 0 : i32
    %c0_i32_0 = arith.constant 0 : i32
    %c0_i32_1 = arith.constant 0 : i32
    return %c0_i32, %c0_i32_0 : i32, i32
  }
  func.func @transform_4(%arg0: i32, %arg1: i32) -> (i32, i32) {
    %c0_i32 = arith.constant 0 : i32
    %c0_i32_0 = arith.constant 0 : i32
    %c0_i32_1 = arith.constant 0 : i32
    return %c0_i32, %c0_i32_0 : i32, i32
  }
  func.func @transform_5(%arg0: i32, %arg1: i32) -> (i32, i32, i32) {
    %c0_i32 = arith.constant 0 : i32
    %c0_i32_0 = arith.constant 0 : i32
    return %arg0, %c0_i32, %arg1 : i32, i32, i32
  }
}

</mosaic_0001>

<llo_original>
// kernel: tpu_custom_call.1
$region0: #{tpu_custom_call.1}
  #allocation0 [shape = 'u32[]', space=smem, size = 0x4, offset = 0x4, fixed_abs, tag = 'smem constant byte address 0x4 - core index']
  #allocation1 [shape = 'u32[144,128]{1,0:T(1,128)}', space=vmem, size = 0x12000, scoped, tag = 'internal scratch']
  %s0 = inlined_call_operand.vmem [shape: bf16[2,3,256], index: 0, kind: input, shape index: {}]
  %s1 = inlined_call_operand.vmem [shape: f32[2,64,1], index: 1, kind: input, shape index: {}]
  %s2 = inlined_call_operand.vmem [shape: bf16[64,3], index: 2, kind: input, shape index: {}]
  %s3 = inlined_call_operand.vmem [shape: bf16[4,64], index: 3, kind: input, shape index: {}]
  %s4 = inlined_call_operand.vmem [shape: f32[4,1], index: 4, kind: input, shape index: {}]
  %s5 = inlined_call_operand.hbm [shape: f32[2,4,256], index: 5, kind: output, shape index: {}]
  %s6 = sld [smem:[#allocation0]]
  $region53: #{tpu_custom_call.1} parent=0
    _
  %s8 = ssub.s32 1, %s6
  %s9 = scalar_select 0, %s8, %s6
  $region1: #{tpu_custom_call.1} parent=0
    #allocation2 [shape = 'u8[8192]{0}', space=vmem, size = 0x2000, scoped, tag = 'output window, operand 0']
    #allocation3 [shape = 's32[2]{0}', space=sflag, size = 0x8, scoped, tag = 'scoped memory for tpu_custom_call.1']
    %10 = vsyncpa [#allocation3], 0
    %s11 = scalar_lea.sflag [#allocation3], 1
    %12 = vsyncpa %s11, 0
    loop: start=0, step=1, limit=4
    $region2: #{tpu_custom_call.1} parent=1 // loop_pre_header
      _
    $region3: #{tpu_custom_call.1} parent=1 // loop_header
      %s14 = sphi 0, %s18
      %p15 = scmp.ge.s32.totalorder %s14, 4
      %s21 = sphi 0, %s33
      %s22 = sphi 0, %s29
      %s23 = sphi 0, %s21
      %s24 = sphi 0, %s22
      %s25 = sphi 0, %s23
      %s26 = sphi 0, %s24
      %s38 = sphi 0, %s40
      %s41 = sphi 0, %s38
      %s42 = sphi 0, %s41
      %s58 = sphi 0, %s42
      %s64 = sphi 0, %s66
      %s67 = sphi 0, %s64
      %s68 = sphi 0, %s67
      %s84 = sphi 0, %s68
      %s88 = sphi 0, %s88
      %s90 = sphi 0, %s88
      %s91 = sphi 0, %s90
      %s105 = sphi 0, %s91
      %s109 = sphi 0, %s109
      %s111 = sphi 0, %s109
      %s112 = sphi 0, %s111
      %s126 = sphi 0, %s112
      %s130 = sphi 0, %s130
      %s132 = sphi 0, %s130
      %s133 = sphi 0, %s132
      %s147 = sphi 0, %s133
      %s155 = sphi 0, %s157
      %s158 = sphi 0, %s155
      %s159 = sphi 0, %s158
      %s175 = sphi 0, %s159
    $region4: #{tpu_custom_call.1} parent=1 // loop_header_branch
      %17 = sbr.rel (%p15) target = $region8
    $region5: #{tpu_custom_call.1} parent=1 // loop_body
      %s19 = ssub.s32 %s14, 1
      %s20 = ssub.s32 %s14, 2
      %s27 = sadd.s32 1, %s22
      %p28 = scmp.ge.s32.totalorder %s27, 1
      %s29 = scalar_select %p28, 0, %s27
      %s30 = sadd.s32 1, %s21
      %s31 = scalar_select %p28, %s30, %s21
      %p32 = scmp.ge.s32.totalorder %s31, 2
      %s33 = scalar_select %p32, 0, %s31
      %s34 = ssub.s32 %s21, %s33
      %s35 = ssub.s32 %s22, %s29
      %s36 = sor.u32 %s34, %s35
      %p37 = scmp.eq.s32.totalorder %s36, 0
      %s39 = sadd.s32 %s38, 1
      %s40 = scalar_select %p37, %s38, %s39
      %p43 = pneg %p37
      %p44 = scmp.eq.s32.totalorder %s14, 1
      %p45 = por %p43, %p44
      %p46 = scmp.ne.s32.totalorder %s38, %s41
      %p47 = scmp.eq.s32.totalorder %s14, 0
      %p48 = por %p46, %p47
      %p49 = scmp.ne.s32.totalorder %s38, %s41
      %p50 = scmp.eq.s32.totalorder %s19, 1
      %p51 = por %p49, %p50
      %p52 = scmp.ne.s32.totalorder %s41, %s42
      %p53 = scmp.eq.s32.totalorder %s19, 0
      %p54 = por %p52, %p53
      %p55 = scmp.ne.s32.totalorder %s41, %s42
      %p56 = scmp.eq.s32.totalorder %s20, 1
      %p57 = por %p55, %p56
      %p59 = scmp.ne.s32.totalorder %s42, %s58
      %p60 = scmp.eq.s32.totalorder %s20, 0
      %p61 = por %p59, %p60
      %s62 = ssub.s32 %s21, %s33
      %p63 = scmp.eq.s32.totalorder %s62, 0
      %s65 = sadd.s32 %s64, 1
      %s66 = scalar_select %p63, %s64, %s65
      %p69 = pneg %p63
      %p70 = scmp.eq.s32.totalorder %s14, 1
      %p71 = por %p69, %p70
      %p72 = scmp.ne.s32.totalorder %s64, %s67
      %p73 = scmp.eq.s32.totalorder %s14, 0
      %p74 = por %p72, %p73
      %p75 = scmp.ne.s32.totalorder %s64, %s67
      %p76 = scmp.eq.s32.totalorder %s19, 1
      %p77 = por %p75, %p76
      %p78 = scmp.ne.s32.totalorder %s67, %s68
      %p79 = scmp.eq.s32.totalorder %s19, 0
      %p80 = por %p78, %p79
      %p81 = scmp.ne.s32.totalorder %s67, %s68
      %p82 = scmp.eq.s32.totalorder %s20, 1
      %p83 = por %p81, %p82
      %p85 = scmp.ne.s32.totalorder %s68, %s84
      %p86 = scmp.eq.s32.totalorder %s20, 0
      %p87 = por %p85, %p86
      %s89 = sadd.s32 %s88, 1
      %p92 = scmp.eq.s32.totalorder %s14, 1
      %p93 = scmp.ne.s32.totalorder %s88, %s90
      %p94 = scmp.eq.s32.totalorder %s14, 0
      %p95 = por %p93, %p94
      %p96 = scmp.ne.s32.totalorder %s88, %s90
      %p97 = scmp.eq.s32.totalorder %s19, 1
      %p98 = por %p96, %p97
      %p99 = scmp.ne.s32.totalorder %s90, %s91
      %p100 = scmp.eq.s32.totalorder %s19, 0
      %p101 = por %p99, %p100
      %p102 = scmp.ne.s32.totalorder %s90, %s91
      %p103 = scmp.eq.s32.totalorder %s20, 1
      %p104 = por %p102, %p103
      %p106 = scmp.ne.s32.totalorder %s91, %s105
      %p107 = scmp.eq.s32.totalorder %s20, 0
      %p108 = por %p106, %p107
      %s110 = sadd.s32 %s109, 1
      %p113 = scmp.eq.s32.totalorder %s14, 1
      %p114 = scmp.ne.s32.totalorder %s109, %s111
      %p115 = scmp.eq.s32.totalorder %s14, 0
      %p116 = por %p114, %p115
      %p117 = scmp.ne.s32.totalorder %s109, %s111
      %p118 = scmp.eq.s32.totalorder %s19, 1
      %p119 = por %p117, %p118
      %p120 = scmp.ne.s32.totalorder %s111, %s112
      %p121 = scmp.eq.s32.totalorder %s19, 0
      %p122 = por %p120, %p121
      %p123 = scmp.ne.s32.totalorder %s111, %s112
      %p124 = scmp.eq.s32.totalorder %s20, 1
      %p125 = por %p123, %p124
      %p127 = scmp.ne.s32.totalorder %s112, %s126
      %p128 = scmp.eq.s32.totalorder %s20, 0
      %p129 = por %p127, %p128
      %s131 = sadd.s32 %s130, 1
      %p134 = scmp.eq.s32.totalorder %s14, 1
      %p135 = scmp.ne.s32.totalorder %s130, %s132
      %p136 = scmp.eq.s32.totalorder %s14, 0
      %p137 = por %p135, %p136
      %p138 = scmp.ne.s32.totalorder %s130, %s132
      %p139 = scmp.eq.s32.totalorder %s19, 1
      %p140 = por %p138, %p139
      %p141 = scmp.ne.s32.totalorder %s132, %s133
      %p142 = scmp.eq.s32.totalorder %s19, 0
      %p143 = por %p141, %p142
      %p144 = scmp.ne.s32.totalorder %s132, %s133
      %p145 = scmp.eq.s32.totalorder %s20, 1
      %p146 = por %p144, %p145
      %p148 = scmp.ne.s32.totalorder %s133, %s147
      %p149 = scmp.eq.s32.totalorder %s20, 0
      %p150 = por %p148, %p149
      %s151 = ssub.s32 %s21, %s33
      %s152 = ssub.s32 %s22, %s29
      %s153 = sor.u32 %s151, %s152
      %p154 = scmp.eq.s32.totalorder %s153, 0
      %s156 = sadd.s32 %s155, 1
      %s157 = scalar_select %p154, %s155, %s156
      %p160 = pneg %p154
      %p161 = scmp.eq.s32.totalorder %s14, 1
      %p162 = por %p160, %p161
      %p163 = scmp.ne.s32.totalorder %s155, %s158
      %p164 = scmp.eq.s32.totalorder %s14, 0
      %p165 = por %p163, %p164
      %p166 = scmp.ne.s32.totalorder %s155, %s158
      %p167 = scmp.eq.s32.totalorder %s19, 1
      %p168 = por %p166, %p167
      %p169 = scmp.ne.s32.totalorder %s158, %s159
      %p170 = scmp.eq.s32.totalorder %s19, 0
      %p171 = por %p169, %p170
      %p172 = scmp.ne.s32.totalorder %s158, %s159
      %p173 = scmp.eq.s32.totalorder %s20, 1
      %p174 = por %p172, %p173
      %p176 = scmp.ne.s32.totalorder %s159, %s175
      %p177 = scmp.eq.s32.totalorder %s20, 0
      %p178 = por %p176, %p177
      %p179 = scmp.le.s32.totalorder 1, %s14
      %p180 = scmp.lt.s32.totalorder %s14, 3
      %p181 = pnand %p179, %p180
      %p182 = pneg %p181
      // Predicated region
      $region9: #{tpu_custom_call.1} parent=5 // pred_check
        _
      $region10: #{tpu_custom_call.1} parent=5 // pred_check_branch
        %184 = sbr.rel (%p181) target = $region12
      $region11: #{tpu_custom_call.1} parent=5 // pred_region
        %s185 = ssub.s32 %s14, 1
        // Predicated region
        $region13: #{tpu_custom_call.1} parent=11 // pred_check
          %p186 = pneg %p101
        $region14: #{tpu_custom_call.1} parent=11 // pred_check_branch
          %188 = sbr.rel (%p186) target = $region16
        $region15: #{tpu_custom_call.1} parent=11 // pred_region
          _
        $region16: #{tpu_custom_call.1} parent=11 // pred_fallthru
          _
        // Predicated region
        $region17: #{tpu_custom_call.1} parent=11 // pred_check
          %p189 = pneg %p122
        $region18: #{tpu_custom_call.1} parent=11 // pred_check_branch
          %191 = sbr.rel (%p189) target = $region20
        $region19: #{tpu_custom_call.1} parent=11 // pred_region
          _
        $region20: #{tpu_custom_call.1} parent=11 // pred_fallthru
          _
        // Predicated region
        $region21: #{tpu_custom_call.1} parent=11 // pred_check
          %p192 = pneg %p143
        $region22: #{tpu_custom_call.1} parent=11 // pred_check_branch
          %194 = sbr.rel (%p192) target = $region24
        $region23: #{tpu_custom_call.1} parent=11 // pred_region
          _
        $region24: #{tpu_custom_call.1} parent=11 // pred_fallthru
          _
      $region12: #{tpu_custom_call.1} parent=5 // pred_fallthru
        _
      %p195 = scmp.lt.s32.totalorder %s14, 2
      // Predicated region
      $region25: #{tpu_custom_call.1} parent=5 // pred_check
        %p196 = pneg %p195
      $region26: #{tpu_custom_call.1} parent=5 // pred_check_branch
        %198 = sbr.rel (%p196) target = $region28
      $region27: #{tpu_custom_call.1} parent=5 // pred_region
        // Predicated region
        $region29: #{tpu_custom_call.1} parent=27 // pred_check
          %p199 = pneg %p48
        $region30: #{tpu_custom_call.1} parent=27 // pred_check_branch
          %201 = sbr.rel (%p199) target = $region32
        $region31: #{tpu_custom_call.1} parent=27 // pred_region
          %s202 = smul.u32 2, %s22
          %p203 = scmp.lt.s32.totalorder %s21, 1
          %s204 = scalar_select %p203, %s21, 1
          %p205 = scmp.lt.s32.totalorder %s202, 1
          %s206 = scalar_select %p205, %s202, 1
          %s207 = smul.addr %s204, 2
          %s208 = sadd.s32 %s206, %s207
          %s209 = smul.addr %s208, 2
          %s210 = scalar_lea.vmem %s0, %s209
          %s211 = smul.u32 2, %s22
        $region32: #{tpu_custom_call.1} parent=27 // pred_fallthru
          _
        // Predicated region
        $region33: #{tpu_custom_call.1} parent=27 // pred_check
          %p212 = pneg %p74
        $region34: #{tpu_custom_call.1} parent=27 // pred_check_branch
          %214 = sbr.rel (%p212) target = $region36
        $region35: #{tpu_custom_call.1} parent=27 // pred_region
          %p215 = scmp.lt.s32.totalorder %s21, 1
          %s216 = scalar_select %p215, %s21, 1
          %s217 = smul.addr %s216, 8
          %s218 = smul.addr %s217, 8
          %s219 = scalar_lea.vmem %s1, %s218
        $region36: #{tpu_custom_call.1} parent=27 // pred_fallthru
          _
      $region28: #{tpu_custom_call.1} parent=5 // pred_fallthru
        _
      %p220 = scmp.le.s32.totalorder 1, %s14
      %p221 = scmp.lt.s32.totalorder %s14, 3
      %p222 = pnand %p220, %p221
      %p223 = pneg %p222
      // Predicated region
      $region37: #{tpu_custom_call.1} parent=5 // pred_check
        _
      $region38: #{tpu_custom_call.1} parent=5 // pred_check_branch
        %225 = sbr.rel (%p222) target = $region40
      $region39: #{tpu_custom_call.1} parent=5 // pred_region
        %s226 = ssub.s32 %s14, 1
        %s227 = smul.u32 2, %s24
        %p228 = scmp.lt.s32.totalorder %s23, 1
        %s229 = scalar_select %p228, %s23, 1
        %p230 = scmp.lt.s32.totalorder %s227, 1
        %s231 = scalar_select %p230, %s227, 1
        %s232 = smul.addr %s229, 2
        %s233 = sadd.s32 %s231, %s232
        %s234 = smul.addr %s233, 2
        %s235 = scalar_lea.vmem %s0, %s234
        %p236 = pneg %p54
        %p237 = pneg %p51
        %p238 = scmp.lt.s32.totalorder %s23, 1
        %s239 = scalar_select %p238, %s23, 1
        %s240 = smul.addr %s239, 8
        %s241 = smul.addr %s240, 8
        %s242 = scalar_lea.vmem %s1, %s241
        %p243 = pneg %p80
        %p244 = pneg %p77
        %p245 = pneg %p101
        %p246 = pneg %p98
        %p247 = pneg %p122
        %p248 = pneg %p119
        %p249 = pneg %p143
        %p250 = pneg %p140
        %p251 = pneg %p171
        %p252 = pneg %p168
        %s253 = sand.u32 %s158, 1
        %s254 = scalar_lea.sflag [#allocation3], %s253
        %s255 = sand.u32 %s158, 1
        %s256 = smul.addr %s255, 8
        %s257 = scalar_lea.vmem [#allocation2], %s256
        %s258 = smul.u32 2, %s24
        %p259 = scmp.lt.s32.totalorder %s23, 1
        %s260 = scalar_select %p259, %s23, 1
        %p261 = scmp.lt.s32.totalorder %s258, 1
        %s262 = scalar_select %p261, %s258, 1
        %s263 = smul.addr %s260, 2
        %s264 = sadd.s32 %s262, %s263
        %s265 = smul.addr %s264, 2
        %s266 = scalar_lea.vmem %s0, %s265
        %s267 = smul.u32 2, %s24
        %p268 = scmp.lt.s32.totalorder %s23, 1
        %s269 = scalar_select %p268, %s23, 1
        %s270 = smul.addr %s269, 8
        %s271 = smul.addr %s270, 8
        %s272 = scalar_lea.vmem %s1, %s271
        %s273 = smul.u32 2, %s24
        %v275 = vld [vmem:[%s266] sm:$0xf]
        %v276 = vld [vmem:[%s2] sm:$0xf]
        %v277 = vld [vmem:[%s2 + $0x4] sm:$0xf]
        %v278 = vld [vmem:[%s2 + $0x8] sm:$0xf]
        %v279 = vld [vmem:[%s2 + $0xc] sm:$0xf]
        %v280 = vld [vmem:[%s2 + $0x10] sm:$0xf]
        %v281 = vld [vmem:[%s2 + $0x14] sm:$0xf]
        %v282 = vld [vmem:[%s2 + $0x18] sm:$0xf]
        %v283 = vld [vmem:[%s2 + $0x1c] sm:$0xf]
        %v284 = vld [vmem:[%s272] sm:$0xff]
        %v285 = vld [vmem:[%s272 + $0x8] sm:$0xff]
        %v286 = vld [vmem:[%s272 + $0x10] sm:$0xff]
        %v287 = vld [vmem:[%s272 + $0x18] sm:$0xff]
        %v288 = vld [vmem:[%s272 + $0x20] sm:$0xff]
        %v289 = vld [vmem:[%s272 + $0x28] sm:$0xff]
        %v290 = vld [vmem:[%s272 + $0x30] sm:$0xff]
        %v291 = vld [vmem:[%s272 + $0x38] sm:$0xff]
        %293 = vset.pattern.permute.xlu0 0
        %294 = vperm.xlu0 %293, %v284
        %v295 = vpop.permute.xlu0 %294
        %298 = vset.pattern.permute.xlu0 0
        %299 = vperm.xlu0 %298, %v285
        %v300 = vpop.permute.xlu0 %299
        %303 = vset.pattern.permute.xlu0 0
        %304 = vperm.xlu0 %303, %v286
        %v305 = vpop.permute.xlu0 %304
        %308 = vset.pattern.permute.xlu0 0
        %309 = vperm.xlu0 %308, %v287
        %v310 = vpop.permute.xlu0 %309
        %313 = vset.pattern.permute.xlu0 0
        %314 = vperm.xlu0 %313, %v288
        %v315 = vpop.permute.xlu0 %314
        %318 = vset.pattern.permute.xlu0 0
        %319 = vperm.xlu0 %318, %v289
        %v320 = vpop.permute.xlu0 %319
        %323 = vset.pattern.permute.xlu0 0
        %324 = vperm.xlu0 %323, %v290
        %v325 = vpop.permute.xlu0 %324
        %328 = vset.pattern.permute.xlu0 0
        %329 = vperm.xlu0 %328, %v291
        %v330 = vpop.permute.xlu0 %329
        %v340 = vunpack.c.l.b16 %v276
        %v341 = vunpack.c.l.b16 %v277
        %v342 = vunpack.c.l.b16 %v278
        %v343 = vunpack.c.l.b16 %v279
        %v344 = vunpack.c.l.b16 %v280
        %v345 = vunpack.c.l.b16 %v281
        %v346 = vunpack.c.l.b16 %v282
        %v347 = vunpack.c.l.b16 %v283
        %v348 = vpack.c.b16 %v341, %v340
        %v349 = vpack.c.b16 %v343, %v342
        %v350 = vpack.c.b16 %v345, %v344
        %v351 = vpack.c.b16 %v347, %v346
        %v354 = vunpack.c.l.s4 1983009808
        %v355 = vunpack.c.0.s8 %v354
        %v356 = vlaneseq
        %v357 = vshrl.u32 %v356, 7
        %v358 = vsub.s32 %v355, %v357
        %v359 = vrot.slane %v275, %v358
        %v360 = vcombine.high %v359, %v359
        %vm361 = vcmask 23552
        %v363 = vsel %vm361, %v348, 0
        %v366 = vsel %vm361, %v349, 0
        %v369 = vsel %vm361, %v350, 0
        %v372 = vsel %vm361, %v351, 0
        %vm374 = vcmask 1040384
        %vm375 = vcmask 1041408
        %v376 = vsel %vm374, 4294967295, 65535
        %v377 = vsel %vm375, %v376, 0
        %v379 = vand.u32 %v359, %v377
        %v382 = vand.u32 %v360, %v377
        %384 = vmatprep.subr.bf16.mxu0 %v382
        %385 = vmatpush1.bf16.msra.mxu0 %v379
        %386 = vmatprep.subr.bf16.mxu0 0
        %387 = vmatpush1.bf16.msra.mxu0 0
        %388 = vmatprep.subr.bf16.mxu0 0
        %389 = vmatpush1.bf16.msra.mxu0 0
        %390 = vmatprep.subr.bf16.mxu0 0
        %391 = vmatpush1.bf16.msra.mxu0 0
        %392 = vmatprep.subr.bf16.mxu0 0
        %393 = vmatpush1.bf16.msra.mxu0 0
        %394 = vmatprep.subr.bf16.mxu0 0
        %395 = vmatpush1.bf16.msra.mxu0 0
        %396 = vmatprep.subr.bf16.mxu0 0
        %397 = vmatpush1.bf16.msra.mxu0 0
        %398 = vmatprep.subr.bf16.mxu0 0
        %399 = vmatpush1.bf16.msra.mxu0 0
        %400 = vmatprep.subr.bf16.mxu0 0
        %401 = vmatpush1.bf16.msra.mxu0 0
        %402 = vmatprep.subr.bf16.mxu0 0
        %403 = vmatpush1.bf16.msra.mxu0 0
        %404 = vmatprep.subr.bf16.mxu0 0
        %405 = vmatpush1.bf16.msra.mxu0 0
        %406 = vmatprep.subr.bf16.mxu0 0
        %407 = vmatpush1.bf16.msra.mxu0 0
        %408 = vmatprep.subr.bf16.mxu0 0
        %409 = vmatpush1.bf16.msra.mxu0 0
        %410 = vmatprep.subr.bf16.mxu0 0
        %411 = vmatpush1.bf16.msra.mxu0 0
        %412 = vmatprep.subr.bf16.mxu0 0
        %413 = vmatpush1.bf16.msra.mxu0 0
        %414 = vmatprep.subr.bf16.mxu0 0
        %415 = vmatpush1.bf16.msra.mxu0 0
        %416 = vmatprep.mubr.bf16.mxu0 0
        %417 = vmatmul.mubr.bf16.gmra.mrb[0].mxu0 %v363
        %v418 = vpop.f32.mrb[0].mxu0
        %v419 = vadd.f32 %v295, %v418
        %v420 = vpop.f32.mrb[0].mxu0
        %v421 = vadd.f32 %v295, %v420
        %v422 = vpop.f32.mrb[0].mxu0
        %v423 = vadd.f32 %v300, %v422
        %v424 = vpop.f32.mrb[0].mxu0
        %v425 = vadd.f32 %v300, %v424
        %426 = vmatprep.mubr.bf16.mxu0 0
        %427 = vmatmul.mubr.bf16.gmra.mrb[0].mxu0 %v366
        %v428 = vpop.f32.mrb[0].mxu0
        %v429 = vadd.f32 %v305, %v428
        %v430 = vpop.f32.mrb[0].mxu0
        %v431 = vadd.f32 %v305, %v430
        %v432 = vpop.f32.mrb[0].mxu0
        %v433 = vadd.f32 %v310, %v432
        %v434 = vpop.f32.mrb[0].mxu0
        %v435 = vadd.f32 %v310, %v434
        %436 = vmatprep.mubr.bf16.mxu0 0
        %437 = vmatmul.mubr.bf16.gmra.mrb[0].mxu0 %v369
        %v438 = vpop.f32.mrb[0].mxu0
        %v439 = vadd.f32 %v315, %v438
        %v440 = vpop.f32.mrb[0].mxu0
        %v441 = vadd.f32 %v315, %v440
        %v442 = vpop.f32.mrb[0].mxu0
        %v443 = vadd.f32 %v320, %v442
        %v444 = vpop.f32.mrb[0].mxu0
        %v445 = vadd.f32 %v320, %v444
        %446 = vmatprep.mubr.bf16.mxu0 0
        %447 = vmatmul.mubr.bf16.gmra.mrb[0].mxu0 %v372
        %v448 = vpop.f32.mrb[0].mxu0
        %v449 = vadd.f32 %v325, %v448
        %v450 = vpop.f32.mrb[0].mxu0
        %v451 = vadd.f32 %v325, %v450
        %v452 = vpop.f32.mrb[0].mxu0
        %v453 = vadd.f32 %v330, %v452
        %v454 = vpop.f32.mrb[0].mxu0
        %v455 = vadd.f32 %v330, %v454
        %456 = vdwg.mxu0
        %v457 = vmax.f32 %v419, 0.0
        %v458 = vmax.f32 %v421, 0.0
        %v459 = vmax.f32 %v423, 0.0
        %v460 = vmax.f32 %v425, 0.0
        %v461 = vmax.f32 %v429, 0.0
        %v462 = vmax.f32 %v431, 0.0
        %v463 = vmax.f32 %v433, 0.0
        %v464 = vmax.f32 %v435, 0.0
        %v465 = vmax.f32 %v439, 0.0
        %v466 = vmax.f32 %v441, 0.0
        %v467 = vmax.f32 %v443, 0.0
        %v468 = vmax.f32 %v445, 0.0
        %v469 = vmax.f32 %v449, 0.0
        %v470 = vmax.f32 %v451, 0.0
        %v471 = vmax.f32 %v453, 0.0
        %v472 = vmax.f32 %v455, 0.0
        %v473 = vld [vmem:[%s3] sm:$0x3]
        %v474 = vpack.c.bf16 %v459, %v457
        %v475 = vpack.c.bf16 %v460, %v458
        %v476 = vpack.c.bf16 %v463, %v461
        %v477 = vpack.c.bf16 %v464, %v462
        %v478 = vpack.c.bf16 %v467, %v465
        %v479 = vpack.c.bf16 %v468, %v466
        %v480 = vpack.c.bf16 %v471, %v469
        %v481 = vpack.c.bf16 %v472, %v470
        %v482 = vld [vmem:[%s4] sm:$0xf]
        %484 = vset.pattern.permute.xlu0 0
        %485 = vperm.xlu0 %484, %v482
        %v486 = vpop.permute.xlu0 %485
        %vm488 = vcmask 523264
        %v490 = vsel %vm488, %v473, 0
        %492 = vmatprep.subr.bf16.mxu0 %v475
        %493 = vmatpush1.bf16.msra.mxu0 %v474
        %494 = vmatprep.subr.bf16.mxu0 %v477
        %495 = vmatpush1.bf16.msra.mxu0 %v476
        %496 = vmatprep.subr.bf16.mxu0 %v479
        %497 = vmatpush1.bf16.msra.mxu0 %v478
        %498 = vmatprep.subr.bf16.mxu0 %v481
        %499 = vmatpush1.bf16.msra.mxu0 %v480
        %500 = vmatprep.subr.bf16.mxu0 0
        %501 = vmatpush1.bf16.msra.mxu0 0
        %502 = vmatprep.subr.bf16.mxu0 0
        %503 = vmatpush1.bf16.msra.mxu0 0
        %504 = vmatprep.subr.bf16.mxu0 0
        %505 = vmatpush1.bf16.msra.mxu0 0
        %506 = vmatprep.subr.bf16.mxu0 0
        %507 = vmatpush1.bf16.msra.mxu0 0
        %508 = vmatprep.subr.bf16.mxu0 0
        %509 = vmatpush1.bf16.msra.mxu0 0
        %510 = vmatprep.subr.bf16.mxu0 0
        %511 = vmatpush1.bf16.msra.mxu0 0
        %512 = vmatprep.subr.bf16.mxu0 0
        %513 = vmatpush1.bf16.msra.mxu0 0
        %514 = vmatprep.subr.bf16.mxu0 0
        %515 = vmatpush1.bf16.msra.mxu0 0
        %516 = vmatprep.subr.bf16.mxu0 0
        %517 = vmatpush1.bf16.msra.mxu0 0
        %518 = vmatprep.subr.bf16.mxu0 0
        %519 = vmatpush1.bf16.msra.mxu0 0
        %520 = vmatprep.subr.bf16.mxu0 0
        %521 = vmatpush1.bf16.msra.mxu0 0
        %522 = vmatprep.subr.bf16.mxu0 0
        %523 = vmatpush1.bf16.msra.mxu0 0
        %524 = vmatprep.mubr.bf16.mxu0 0
        %525 = vmatmul.mubr.bf16.gmra.mrb[0].mxu0 %v490
        %v526 = vpop.f32.mrb[0].mxu0
        %v527 = vadd.f32 %v486, %v526
        %v528 = vpop.f32.mrb[0].mxu0
        %v529 = vadd.f32 %v486, %v528
        %v530 = vpop.f32.mrb[0].mxu0
        %v531 = vpop.f32.mrb[0].mxu0
        %532 = vdwg.mxu0
        %v535 = vcombine.low %v527, %v529
        %537 = vst [vmem:[%s257] sm:$0xff] %v535
        %s538 = sand.u32 %s158, 1
        %s539 = scalar_lea.sflag [#allocation3], %s538
        %s540 = sand.u32 %s158, 1
        %s541 = smul.addr %s540, 8
        %s542 = scalar_lea.vmem [#allocation2], %s541
        // Predicated region
        $region41: #{tpu_custom_call.1} parent=39 // pred_check
          %p543 = pneg %p168
        $region42: #{tpu_custom_call.1} parent=39 // pred_check_branch
          %545 = sbr.rel (%p543) target = $region44
        $region43: #{tpu_custom_call.1} parent=39 // pred_region
          %s546 = smul.u32 2, %s24
          %s548 = ssub.s32 128, 128
          %549 = vsyncadd %s539, %s548
          %s550 = smul.addr %s23, 2
          %s551 = sadd.s32 %s546, %s550
          %s552 = smul.addr %s551, 64
          %s553 = scalar_lea.hbm %s5, %s552
          %s555 = sshll.u32 %s542, 4
          %s556 = int_to_ptr.vmem [resolvable:$true] %s555
          %558 = dma.vmem_to_hbm [thread:$0]  %s556, 128, %s553, %s539
        $region44: #{tpu_custom_call.1} parent=39 // pred_fallthru
          _
      $region40: #{tpu_custom_call.1} parent=5 // pred_fallthru
        _
      %p559 = scmp.le.s32.totalorder 2, %s14
      // Predicated region
      $region45: #{tpu_custom_call.1} parent=5 // pred_check
        %p560 = pneg %p559
      $region46: #{tpu_custom_call.1} parent=5 // pred_check_branch
        %562 = sbr.rel (%p560) target = $region48
      $region47: #{tpu_custom_call.1} parent=5 // pred_region
        %s563 = ssub.s32 %s14, 2
        // Predicated region
        $region49: #{tpu_custom_call.1} parent=47 // pred_check
          %p564 = pneg %p174
        $region50: #{tpu_custom_call.1} parent=47 // pred_check_branch
          %566 = sbr.rel (%p564) target = $region52
        $region51: #{tpu_custom_call.1} parent=47 // pred_region
          %s567 = sand.u32 %s159, 1
          %s568 = scalar_lea.sflag [#allocation3], %s567
          %s569 = sand.u32 %s159, 1
          %s570 = smul.addr %s569, 8
          %s571 = scalar_lea.vmem [#allocation2], %s570
          %572 = dma.done %s568, 128
        $region52: #{tpu_custom_call.1} parent=47 // pred_fallthru
          _
      $region48: #{tpu_custom_call.1} parent=5 // pred_fallthru
        _
    $region6: #{tpu_custom_call.1} parent=1 // loop_footer
      %s18 = sadd.s32 1, %s14
    $region7: #{tpu_custom_call.1} parent=1 // loop_footer_branch
      %13 = sbr.rel target = $region3
    $region8: #{tpu_custom_call.1} parent=1 // loop_exit
      _
    %573 = vsyncpa [#allocation3], 1
    %s574 = scalar_lea.sflag [#allocation3], 1
    %575 = vsyncpa %s574, 1

</llo_original>
